<compile_context>
chip_gen: v6e
topology: v6e:2x2x1
jax: 0.10.0
libtpu: 0.0.40
codegen_flags: <defaults>
</compile_context>

<pallas_src>
import functools

import jax
import jax.numpy as jnp
from jax import lax
from jax.experimental import pallas as pl
from jax.experimental.pallas import tpu as pltpu  # noqa: F401  (TPU backend / future tiling)


def _gcn2_stack_kernel(a_ref, x_ref, ax0_ref, w_ref, o_ref, *, num_layers, residual):
    """All L GCNII layers fused into a single kernel invocation.

    a_ref   : [N, N]    bf16  A_eff = (1-alpha) * D^{-1/2}(A+I)D^{-1/2}
    x_ref   : [N, F]    f32   initial activations (batch.x)
    ax0_ref : [N, F]    f32   alpha * x0  (pre-scaled once; layer-invariant)
    w_ref   : [L, F, F] bf16  W_eff[l] = (1-beta_l) I + beta_l W1[l]
    o_ref   : [N, F]    f32   final activations (written exactly once)
    """
    a = a_ref[...]        # layer-invariant, hoisted out of the loop
    ax0 = ax0_ref[...]    # layer-invariant, hoisted out of the loop

    def layer_body(l, act):
        # Propagation: h = (1-alpha) * A_hat @ act   (MXU, bf16 in, f32 acc)
        h = jnp.dot(a, act.astype(jnp.bfloat16),
                    preferred_element_type=jnp.float32)
        # Initial residual: s = (1-alpha)*A_hat@act + alpha*x0
        s = h + ax0
        # Identity-mapping mix folded into W_eff: out = s @ ((1-beta)I + beta*W1)
        out = jnp.dot(s.astype(jnp.bfloat16), w_ref[l],
                      preferred_element_type=jnp.float32)
        # ReLU
        out = jnp.maximum(out, 0.0)
        # Dropout: eval mode (training=False) -> identity.
        # TODO(synk): training-mode dropout would need pltpu.prng_seed/prng_random_bits.
        if residual:
            out = act + out
        return out

    act = lax.fori_loop(0, num_layers, layer_body, x_ref[...], unroll=True)
    o_ref[...] = act.astype(o_ref.dtype)


def gcn2_stack(x, x0, a_hat, w1_stack, *, alpha, theta, residual):
    """Fused forward of L stacked GCN2ConvLayer modules in one pallas_call.

    x        : [N, F] f32     batch.x
    x0       : [N, F] f32     batch.x0
    a_hat    : [N, N] f32     normalized adjacency (with self loops)
    w1_stack : [L, F, F] f32  per-layer GCN2Conv.weight1 (index l -> layer=l+1)
    """
    n, f = x.shape
    num_layers = int(w1_stack.shape[0])

    # Layer-invariant wrapper-side prep (done once, reused across all layers):
    #   A_eff    = (1-alpha) * A_hat
    #   alpha_x0 = alpha * x0
    #   W_eff[l] = (1-beta_l) I + beta_l W1[l],  beta_l = log(theta/(l+1) + 1)
    a_eff = ((1.0 - alpha) * a_hat).astype(jnp.bfloat16)
    alpha_x0 = (alpha * x0).astype(jnp.float32)
    layer_ids = jnp.arange(1, num_layers + 1, dtype=jnp.float32)
    betas = jnp.log(theta / layer_ids + 1.0)                              # [L]
    eye = jnp.eye(f, dtype=jnp.float32)
    w_eff = ((1.0 - betas)[:, None, None] * eye[None]
             + betas[:, None, None] * w1_stack).astype(jnp.bfloat16)      # [L, F, F]

    kernel = functools.partial(_gcn2_stack_kernel,
                               num_layers=num_layers,
                               residual=bool(residual))
    # No grid: everything (a_eff 32 KiB, x/alpha_x0/out 64 KiB each, W_eff
    # stack 128 KiB) fits comfortably in VMEM, so the whole stack runs as a
    # single invocation with zero per-layer grid-step overhead.
    return pl.pallas_call(
        kernel,
        out_shape=jax.ShapeDtypeStruct((n, f), jnp.float32),
    )(a_eff, x, alpha_x0, w_eff)


def build_normalized_adj(edge_index, num_nodes):
    """Dense A_hat = D^{-1/2} (A + I) D^{-1/2}  (glue, plain JAX)."""
    src, dst = edge_index
    a = jnp.zeros((num_nodes, num_nodes), jnp.float32)
    a = a.at[src, dst].set(1.0)
    idx = jnp.arange(num_nodes)
    a = a.at[idx, idx].set(1.0)  # self loops with weight exactly 1
    deg = a.sum(axis=1)
    d_inv_sqrt = jnp.where(deg > 0, 1.0 / jnp.sqrt(deg), 0.0)
    return d_inv_sqrt[:, None] * a * d_inv_sqrt[None, :]


if __name__ == "__main__":
    # Module hyperparameters (mirrors GCN2ConvLayer.__init__; L stacked layers)
    dim = 128            # dim_in == dim_out (GCNII requires equal dims)
    num_layers = 4       # fused stack depth: layers 1..4
    dropout = 0.0        # eval mode -> dropout is identity
    residual = True
    alpha = 0.2
    theta = 0.5

    num_nodes = 128      # M = 128 keeps MXU rows filled on v5e, lane-dense output

    key = jax.random.PRNGKey(0)
    k_x, k_x0, k_w, k_e = jax.random.split(key, 4)

    # Node features and initial features (batch.x, batch.x0)
    x = jax.random.normal(k_x, (num_nodes, dim), jnp.float32)
    x0 = jax.random.normal(k_x0, (num_nodes, dim), jnp.float32)

    # Deterministic synthetic graph: ring + random edges, made undirected.
    ring_src = jnp.arange(num_nodes, dtype=jnp.int32)
    ring_dst = (ring_src + 1) % num_nodes
    rnd_src = jax.random.randint(k_e, (64,), 0, num_nodes, dtype=jnp.int32)
    rnd_dst = jax.random.randint(jax.random.fold_in(k_e, 1), (64,), 0, num_nodes,
                                 dtype=jnp.int32)
    src = jnp.concatenate([ring_src, ring_dst, rnd_src, rnd_dst])
    dst = jnp.concatenate([ring_dst, ring_src, rnd_dst, rnd_src])
    edge_index = jnp.stack([src, dst])

    a_hat = build_normalized_adj(edge_index, num_nodes)

    # GCN2Conv.weight1 per layer: (channels, channels), glorot-uniform init.
    limit = (6.0 / (dim + dim)) ** 0.5
    w1_stack = jax.random.uniform(k_w, (num_layers, dim, dim), jnp.float32,
                                  -limit, limit)

    out = gcn2_stack(x, x0, a_hat, w1_stack, alpha=alpha, theta=theta,
                     residual=residual)
    jax.block_until_ready(out)

    # Pure-JAX reference with the same bf16-input / f32-accumulation matmuls.
    a_eff_ref = ((1.0 - alpha) * a_hat).astype(jnp.bfloat16)
    alpha_x0_ref = (alpha * x0).astype(jnp.float32)
    eye = jnp.eye(dim, dtype=jnp.float32)
    act = x
    for l in range(num_layers):
        beta = float(jnp.log(theta / (l + 1) + 1.0))
        w_eff_l = ((1.0 - beta) * eye + beta * w1_stack[l]).astype(jnp.bfloat16)
        h = jnp.dot(a_eff_ref, act.astype(jnp.bfloat16),
                    preferred_element_type=jnp.float32)
        s = h + alpha_x0_ref
        o = jnp.dot(s.astype(jnp.bfloat16), w_eff_l,
                    preferred_element_type=jnp.float32)
        o = jnp.maximum(o, 0.0)
        if residual:
            o = act + o
        act = o
    ref = act

    assert jnp.allclose(out, ref, atol=1e-2, rtol=1e-2), "mismatch vs reference"
    print("KERNEL_OK")
</pallas_src>

<mosaic_0001>
module attributes {stable_mosaic.version = 11 : i64} {
  func.func @_gcn2_stack_kernel(%arg0: memref<128x128xbf16, #tpu.memory_space<vmem>>, %arg1: memref<128x128xf32, #tpu.memory_space<vmem>>, %arg2: memref<128x128xf32, #tpu.memory_space<vmem>>, %arg3: memref<4x128x128xbf16, #tpu.memory_space<vmem>>, %arg4: memref<128x128xf32, #tpu.memory_space<vmem>>) attributes {dimension_semantics = [], scalar_prefetch = 0 : i64, scratch_operands = 0 : i64, tpu.core_type = #tpu.core_type<tc>} {
    %c0 = arith.constant 0 : index
    %c0_0 = arith.constant 0 : index
    %0 = vector.load %arg0[%c0, %c0_0] : memref<128x128xbf16, #tpu.memory_space<vmem>>, vector<128x128xbf16>
    %c0_1 = arith.constant 0 : index
    %c0_2 = arith.constant 0 : index
    %1 = vector.load %arg2[%c0_1, %c0_2] : memref<128x128xf32, #tpu.memory_space<vmem>>, vector<128x128xf32>
    %c0_3 = arith.constant 0 : index
    %c0_4 = arith.constant 0 : index
    %2 = vector.load %arg1[%c0_3, %c0_4] : memref<128x128xf32, #tpu.memory_space<vmem>>, vector<128x128xf32>
    %c0_i32 = arith.constant 0 : i32
    %3 = arith.truncf %2 : vector<128x128xf32> to vector<128x128xbf16>
    %cst = arith.constant dense<0.000000e+00> : vector<128x128xf32>
    %4 = tpu.matmul %0, %3, %cst {dimension_numbers = #tpu.dot_dimension_numbers<[1], [0], [0], [1], [0, 0, 1, 1], [], []>} : vector<128x128xbf16>, vector<128x128xbf16>, vector<128x128xf32> -> vector<128x128xf32>
    %5 = arith.addf %4, %1 : vector<128x128xf32>
    %6 = arith.truncf %5 : vector<128x128xf32> to vector<128x128xbf16>
    %7 = arith.index_cast %c0_i32 : i32 to index
    %c0_5 = arith.constant 0 : index
    %c0_6 = arith.constant 0 : index
    %8 = vector.load %arg3[%7, %c0_5, %c0_6] : memref<4x128x128xbf16, #tpu.memory_space<vmem>>, vector<1x128x128xbf16>
    %9 = vector.shape_cast %8 : vector<1x128x128xbf16> to vector<128x128xbf16>
    %cst_7 = arith.constant dense<0.000000e+00> : vector<128x128xf32>
    %10 = tpu.matmul %6, %9, %cst_7 {dimension_numbers = #tpu.dot_dimension_numbers<[1], [0], [0], [1], [0, 0, 1, 1], [], []>} : vector<128x128xbf16>, vector<128x128xbf16>, vector<128x128xf32> -> vector<128x128xf32>
    %cst_8 = arith.constant 0.000000e+00 : f32
    %11 = vector.broadcast %cst_8 : f32 to vector<128x128xf32>
    %12 = arith.maximumf %10, %11 : vector<128x128xf32>
    %13 = arith.addf %2, %12 : vector<128x128xf32>
    %c1_i32 = arith.constant 1 : i32
    %14 = arith.truncf %13 : vector<128x128xf32> to vector<128x128xbf16>
    %cst_9 = arith.constant dense<0.000000e+00> : vector<128x128xf32>
    %15 = tpu.matmul %0, %14, %cst_9 {dimension_numbers = #tpu.dot_dimension_numbers<[1], [0], [0], [1], [0, 0, 1, 1], [], []>} : vector<128x128xbf16>, vector<128x128xbf16>, vector<128x128xf32> -> vector<128x128xf32>
    %16 = arith.addf %15, %1 : vector<128x128xf32>
    %17 = arith.truncf %16 : vector<128x128xf32> to vector<128x128xbf16>
    %18 = arith.index_cast %c1_i32 : i32 to index
    %c0_10 = arith.constant 0 : index
    %c0_11 = arith.constant 0 : index
    %19 = vector.load %arg3[%18, %c0_10, %c0_11] : memref<4x128x128xbf16, #tpu.memory_space<vmem>>, vector<1x128x128xbf16>
    %20 = vector.shape_cast %19 : vector<1x128x128xbf16> to vector<128x128xbf16>
    %cst_12 = arith.constant dense<0.000000e+00> : vector<128x128xf32>
    %21 = tpu.matmul %17, %20, %cst_12 {dimension_numbers = #tpu.dot_dimension_numbers<[1], [0], [0], [1], [0, 0, 1, 1], [], []>} : vector<128x128xbf16>, vector<128x128xbf16>, vector<128x128xf32> -> vector<128x128xf32>
    %cst_13 = arith.constant 0.000000e+00 : f32
    %22 = vector.broadcast %cst_13 : f32 to vector<128x128xf32>
    %23 = arith.maximumf %21, %22 : vector<128x128xf32>
    %24 = arith.addf %13, %23 : vector<128x128xf32>
    %c2_i32 = arith.constant 2 : i32
    %25 = arith.truncf %24 : vector<128x128xf32> to vector<128x128xbf16>
    %cst_14 = arith.constant dense<0.000000e+00> : vector<128x128xf32>
    %26 = tpu.matmul %0, %25, %cst_14 {dimension_numbers = #tpu.dot_dimension_numbers<[1], [0], [0], [1], [0, 0, 1, 1], [], []>} : vector<128x128xbf16>, vector<128x128xbf16>, vector<128x128xf32> -> vector<128x128xf32>
    %27 = arith.addf %26, %1 : vector<128x128xf32>
    %28 = arith.truncf %27 : vector<128x128xf32> to vector<128x128xbf16>
    %29 = arith.index_cast %c2_i32 : i32 to index
    %c0_15 = arith.constant 0 : index
    %c0_16 = arith.constant 0 : index
    %30 = vector.load %arg3[%29, %c0_15, %c0_16] : memref<4x128x128xbf16, #tpu.memory_space<vmem>>, vector<1x128x128xbf16>
    %31 = vector.shape_cast %30 : vector<1x128x128xbf16> to vector<128x128xbf16>
    %cst_17 = arith.constant dense<0.000000e+00> : vector<128x128xf32>
    %32 = tpu.matmul %28, %31, %cst_17 {dimension_numbers = #tpu.dot_dimension_numbers<[1], [0], [0], [1], [0, 0, 1, 1], [], []>} : vector<128x128xbf16>, vector<128x128xbf16>, vector<128x128xf32> -> vector<128x128xf32>
    %cst_18 = arith.constant 0.000000e+00 : f32
    %33 = vector.broadcast %cst_18 : f32 to vector<128x128xf32>
    %34 = arith.maximumf %32, %33 : vector<128x128xf32>
    %35 = arith.addf %24, %34 : vector<128x128xf32>
    %c3_i32 = arith.constant 3 : i32
    %36 = arith.truncf %35 : vector<128x128xf32> to vector<128x128xbf16>
    %cst_19 = arith.constant dense<0.000000e+00> : vector<128x128xf32>
    %37 = tpu.matmul %0, %36, %cst_19 {dimension_numbers = #tpu.dot_dimension_numbers<[1], [0], [0], [1], [0, 0, 1, 1], [], []>} : vector<128x128xbf16>, vector<128x128xbf16>, vector<128x128xf32> -> vector<128x128xf32>
    %38 = arith.addf %37, %1 : vector<128x128xf32>
    %39 = arith.truncf %38 : vector<128x128xf32> to vector<128x128xbf16>
    %40 = arith.index_cast %c3_i32 : i32 to index
    %c0_20 = arith.constant 0 : index
    %c0_21 = arith.constant 0 : index
    %41 = vector.load %arg3[%40, %c0_20, %c0_21] : memref<4x128x128xbf16, #tpu.memory_space<vmem>>, vector<1x128x128xbf16>
    %42 = vector.shape_cast %41 : vector<1x128x128xbf16> to vector<128x128xbf16>
    %cst_22 = arith.constant dense<0.000000e+00> : vector<128x128xf32>
    %43 = tpu.matmul %39, %42, %cst_22 {dimension_numbers = #tpu.dot_dimension_numbers<[1], [0], [0], [1], [0, 0, 1, 1], [], []>} : vector<128x128xbf16>, vector<128x128xbf16>, vector<128x128xf32> -> vector<128x128xf32>
    %cst_23 = arith.constant 0.000000e+00 : f32
    %44 = vector.broadcast %cst_23 : f32 to vector<128x128xf32>
    %45 = arith.maximumf %43, %44 : vector<128x128xf32>
    %46 = arith.addf %35, %45 : vector<128x128xf32>
    %c4_i32 = arith.constant 4 : i32
    %c0_24 = arith.constant 0 : index
    %c0_25 = arith.constant 0 : index
    %47 = vector.load %arg4[%c0_24, %c0_25] : memref<128x128xf32, #tpu.memory_space<vmem>>, vector<128x128xf32>
    tpu.vector_store %arg4[%c0_24, %c0_25], %46 {strides = array<i32>} : memref<128x128xf32, #tpu.memory_space<vmem>>, vector<128x128xf32>,
    return
  }
}

</mosaic_0001>

<llo_original>
// kernel: tpu_custom_call.1
$region0: #{tpu_custom_call.1}
  #allocation0 [shape = 'u32[]', space=smem, size = 0x4, offset = 0x4, fixed_abs, tag = 'smem constant byte address 0x4 - core index']
  #allocation1 [shape = 'u32[144,128]{1,0:T(1,128)}', space=vmem, size = 0x12000, scoped, tag = 'internal scratch']
  %s0 = inlined_call_operand.hbm [shape: bf16[128,128], index: 0, kind: input, shape index: {}]
  %s1 = inlined_call_operand.hbm [shape: f32[128,128], index: 1, kind: input, shape index: {}]
  %s2 = inlined_call_operand.hbm [shape: f32[128,128], index: 2, kind: input, shape index: {}]
  %s3 = inlined_call_operand.hbm [shape: bf16[4,128,128], index: 3, kind: input, shape index: {}]
  %s4 = inlined_call_operand.hbm [shape: f32[128,128], index: 4, kind: output, shape index: {}]
  %s5 = sld [smem:[#allocation0]]
  $region42: #{tpu_custom_call.1} parent=0
    _
  %s7 = ssub.s32 1, %s5
  %s8 = scalar_select 0, %s7, %s5
  $region1: #{tpu_custom_call.1} parent=0
    #allocation2 [shape = 'u8[32768]{0}', space=vmem, size = 0x8000, scoped, tag = 'input window, operand 0, single buffered']
    #allocation3 [shape = 's32[1]{0}', space=sflag, size = 0x4, scoped, tag = 'scoped memory for tpu_custom_call.1']
    #allocation4 [shape = 's32[1]{0}', space=sflag, size = 0x4, scoped, tag = 'scoped memory for tpu_custom_call.1']
    #allocation5 [shape = 'u8[65536]{0}', space=vmem, size = 0x10000, scoped, tag = 'input window, operand 1, single buffered']
    #allocation6 [shape = 's32[1]{0}', space=sflag, size = 0x4, scoped, tag = 'scoped memory for tpu_custom_call.1']
    #allocation7 [shape = 'u8[65536]{0}', space=vmem, size = 0x10000, scoped, tag = 'input window, operand 2, single buffered']
    #allocation8 [shape = 'u8[131072]{0}', space=vmem, size = 0x20000, scoped, tag = 'input window, operand 3, single buffered']
    #allocation9 [shape = 's32[1]{0}', space=sflag, size = 0x4, scoped, tag = 'scoped memory for tpu_custom_call.1']
    #allocation10 [shape = 'u8[65536]{0}', space=vmem, size = 0x10000, scoped, tag = 'output window, operand 0, single buffered']
    %9 = vsyncpa [#allocation3], 0
    %10 = vsyncpa [#allocation6], 0
    %11 = vsyncpa [#allocation9], 0
    %12 = vsyncpa [#allocation4], 0
    // Predicated region
    $region2: #{tpu_custom_call.1} parent=1 // pred_check
      _
    $region3: #{tpu_custom_call.1} parent=1 // pred_check_branch
      %14 = sbr.rel (0) target = $region5
    $region4: #{tpu_custom_call.1} parent=1 // pred_region
      %s16 = ssub.s32 1024, 1024
      %17 = vsyncadd [#allocation3], %s16
      %s18 = sshll.u32 [#allocation2], 4
      %s19 = int_to_ptr.vmem [resolvable:$true] %s18
      %24 = dma.hbm_to_vmem [thread:$0]  %s0, 1024, %s19, [#allocation3], 64, 64, 4
    $region5: #{tpu_custom_call.1} parent=1 // pred_fallthru
      _
    // Predicated region
    $region6: #{tpu_custom_call.1} parent=1 // pred_check
      _
    $region7: #{tpu_custom_call.1} parent=1 // pred_check_branch
      %26 = sbr.rel (0) target = $region9
    $region8: #{tpu_custom_call.1} parent=1 // pred_region
      %s28 = ssub.s32 2048, 2048
      %29 = vsyncadd [#allocation6], %s28
      %s30 = sshll.u32 [#allocation5], 4
      %s31 = int_to_ptr.vmem [resolvable:$true] %s30
      %36 = dma.hbm_to_vmem [thread:$0]  %s1, 2048, %s31, [#allocation6], 128, 128, 8
    $region9: #{tpu_custom_call.1} parent=1 // pred_fallthru
      _
    // Predicated region
    $region10: #{tpu_custom_call.1} parent=1 // pred_check
      _
    $region11: #{tpu_custom_call.1} parent=1 // pred_check_branch
      %38 = sbr.rel (0) target = $region13
    $region12: #{tpu_custom_call.1} parent=1 // pred_region
      %s40 = ssub.s32 2048, 2048
      %41 = vsyncadd [#allocation6], %s40
      %s42 = sshll.u32 [#allocation7], 4
      %s43 = int_to_ptr.vmem [resolvable:$true] %s42
      %48 = dma.hbm_to_vmem [thread:$0]  %s2, 2048, %s43, [#allocation6], 128, 128, 8
    $region13: #{tpu_custom_call.1} parent=1 // pred_fallthru
      _
    // Predicated region
    $region14: #{tpu_custom_call.1} parent=1 // pred_check
      _
    $region15: #{tpu_custom_call.1} parent=1 // pred_check_branch
      %50 = sbr.rel (0) target = $region17
    $region16: #{tpu_custom_call.1} parent=1 // pred_region
      %s52 = ssub.s32 4096, 4096
      %53 = vsyncadd [#allocation9], %s52
      %s54 = sshll.u32 [#allocation8], 4
      %s55 = int_to_ptr.vmem [resolvable:$true] %s54
      %60 = dma.hbm_to_vmem [thread:$0]  %s3, 4096, %s55, [#allocation9], 64, 64, 4
    $region17: #{tpu_custom_call.1} parent=1 // pred_fallthru
      _
    // Predicated region
    $region18: #{tpu_custom_call.1} parent=1 // pred_check
      _
    $region19: #{tpu_custom_call.1} parent=1 // pred_check_branch
      %62 = sbr.rel (0) target = $region21
    $region20: #{tpu_custom_call.1} parent=1 // pred_region
      %63 = dma.done [#allocation3], 1024
    $region21: #{tpu_custom_call.1} parent=1 // pred_fallthru
      _
    // Predicated region
    $region22: #{tpu_custom_call.1} parent=1 // pred_check
      _
    $region23: #{tpu_custom_call.1} parent=1 // pred_check_branch
      %65 = sbr.rel (0) target = $region25
    $region24: #{tpu_custom_call.1} parent=1 // pred_region
      %66 = dma.done [#allocation6], 2048
    $region25: #{tpu_custom_call.1} parent=1 // pred_fallthru
      _
    // Predicated region
    $region26: #{tpu_custom_call.1} parent=1 // pred_check
      _
    $region27: #{tpu_custom_call.1} parent=1 // pred_check_branch
      %68 = sbr.rel (0) target = $region29
    $region28: #{tpu_custom_call.1} parent=1 // pred_region
      %69 = dma.done [#allocation6], 2048
    $region29: #{tpu_custom_call.1} parent=1 // pred_fallthru
      _
    // Predicated region
    $region30: #{tpu_custom_call.1} parent=1 // pred_check
      _
    $region31: #{tpu_custom_call.1} parent=1 // pred_check_branch
      %71 = sbr.rel (0) target = $region33
    $region32: #{tpu_custom_call.1} parent=1 // pred_region
      %72 = dma.done [#allocation9], 4096
    $region33: #{tpu_custom_call.1} parent=1 // pred_fallthru
      _
    %v74 = vld [vmem:[#allocation2] sm:$0xf]
    %v75 = vld [vmem:[#allocation2 + $0x4] sm:$0xf]
    %v76 = vld [vmem:[#allocation2 + $0x8] sm:$0xf]
    %v77 = vld [vmem:[#allocation2 + $0xc] sm:$0xf]
    %v78 = vld [vmem:[#allocation2 + $0x10] sm:$0xf]
    %v79 = vld [vmem:[#allocation2 + $0x14] sm:$0xf]
    %v80 = vld [vmem:[#allocation2 + $0x18] sm:$0xf]
    %v81 = vld [vmem:[#allocation2 + $0x1c] sm:$0xf]
    %v82 = vld [vmem:[#allocation2 + $0x20] sm:$0xf]
    %v83 = vld [vmem:[#allocation2 + $0x24] sm:$0xf]
    %v84 = vld [vmem:[#allocation2 + $0x28] sm:$0xf]
    %v85 = vld [vmem:[#allocation2 + $0x2c] sm:$0xf]
    %v86 = vld [vmem:[#allocation2 + $0x30] sm:$0xf]
    %v87 = vld [vmem:[#allocation2 + $0x34] sm:$0xf]
    %v88 = vld [vmem:[#allocation2 + $0x38] sm:$0xf]
    %v89 = vld [vmem:[#allocation2 + $0x3c] sm:$0xf]
    %v90 = vld [vmem:[#allocation7] sm:$0xff]
    %v91 = vld [vmem:[#allocation7 + $0x8] sm:$0xff]
    %v92 = vld [vmem:[#allocation7 + $0x10] sm:$0xff]
    %v93 = vld [vmem:[#allocation7 + $0x18] sm:$0xff]
    %v94 = vld [vmem:[#allocation7 + $0x20] sm:$0xff]
    %v95 = vld [vmem:[#allocation7 + $0x28] sm:$0xff]
    %v96 = vld [vmem:[#allocation7 + $0x30] sm:$0xff]
    %v97 = vld [vmem:[#allocation7 + $0x38] sm:$0xff]
    %v98 = vld [vmem:[#allocation7 + $0x40] sm:$0xff]
    %v99 = vld [vmem:[#allocation7 + $0x48] sm:$0xff]
    %v100 = vld [vmem:[#allocation7 + $0x50] sm:$0xff]
    %v101 = vld [vmem:[#allocation7 + $0x58] sm:$0xff]
    %v102 = vld [vmem:[#allocation7 + $0x60] sm:$0xff]
    %v103 = vld [vmem:[#allocation7 + $0x68] sm:$0xff]
    %v104 = vld [vmem:[#allocation7 + $0x70] sm:$0xff]
    %v105 = vld [vmem:[#allocation7 + $0x78] sm:$0xff]
    %v106 = vld [vmem:[#allocation5] sm:$0xff]
    %v107 = vld [vmem:[#allocation5 + $0x8] sm:$0xff]
    %v108 = vld [vmem:[#allocation5 + $0x10] sm:$0xff]
    %v109 = vld [vmem:[#allocation5 + $0x18] sm:$0xff]
    %v110 = vld [vmem:[#allocation5 + $0x20] sm:$0xff]
    %v111 = vld [vmem:[#allocation5 + $0x28] sm:$0xff]
    %v112 = vld [vmem:[#allocation5 + $0x30] sm:$0xff]
    %v113 = vld [vmem:[#allocation5 + $0x38] sm:$0xff]
    %v114 = vld [vmem:[#allocation5 + $0x40] sm:$0xff]
    %v115 = vld [vmem:[#allocation5 + $0x48] sm:$0xff]
    %v116 = vld [vmem:[#allocation5 + $0x50] sm:$0xff]
    %v117 = vld [vmem:[#allocation5 + $0x58] sm:$0xff]
    %v118 = vld [vmem:[#allocation5 + $0x60] sm:$0xff]
    %v119 = vld [vmem:[#allocation5 + $0x68] sm:$0xff]
    %v120 = vld [vmem:[#allocation5 + $0x70] sm:$0xff]
    %v121 = vld [vmem:[#allocation5 + $0x78] sm:$0xff]
    %v122 = vpack.c.bf16 %v107, %v106
    %v123 = vpack.c.bf16 %v109, %v108
    %v124 = vpack.c.bf16 %v111, %v110
    %v125 = vpack.c.bf16 %v113, %v112
    %v126 = vpack.c.bf16 %v115, %v114
    %v127 = vpack.c.bf16 %v117, %v116
    %v128 = vpack.c.bf16 %v119, %v118
    %v129 = vpack.c.bf16 %v121, %v120
    %v146 = vunpack.c.l.b16 %v74
    %v147 = vunpack.c.l.b16 %v75
    %v148 = vunpack.c.l.b16 %v76
    %v149 = vunpack.c.l.b16 %v77
    %v150 = vunpack.c.l.b16 %v78
    %v151 = vunpack.c.l.b16 %v79
    %v152 = vunpack.c.l.b16 %v80
    %v153 = vunpack.c.l.b16 %v81
    %v154 = vunpack.c.l.b16 %v82
    %v155 = vunpack.c.l.b16 %v83
    %v156 = vunpack.c.l.b16 %v84
    %v157 = vunpack.c.l.b16 %v85
    %v158 = vunpack.c.l.b16 %v86
    %v159 = vunpack.c.l.b16 %v87
    %v160 = vunpack.c.l.b16 %v88
    %v161 = vunpack.c.l.b16 %v89
    %v162 = vpack.c.b16 %v147, %v146
    %v163 = vpack.c.b16 %v149, %v148
    %v164 = vpack.c.b16 %v151, %v150
    %v165 = vpack.c.b16 %v153, %v152
    %v166 = vpack.c.b16 %v155, %v154
    %v167 = vpack.c.b16 %v157, %v156
    %v168 = vpack.c.b16 %v159, %v158
    %v169 = vpack.c.b16 %v161, %v160
    %178 = vmatprep.subr.bf16.mxu0 0
    %179 = vmatpush1.bf16.msra.mxu0 %v129
    %180 = vmatprep.subr.bf16.mxu0 0
    %181 = vmatpush1.bf16.msra.mxu0 %v128
    %182 = vmatprep.subr.bf16.mxu0 0
    %183 = vmatpush1.bf16.msra.mxu0 %v127
    %184 = vmatprep.subr.bf16.mxu0 0
    %185 = vmatpush1.bf16.msra.mxu0 %v126
    %186 = vmatprep.subr.bf16.mxu0 0
    %187 = vmatpush1.bf16.msra.mxu0 %v125
    %188 = vmatprep.subr.bf16.mxu0 0
    %189 = vmatpush1.bf16.msra.mxu0 %v124
    %190 = vmatprep.subr.bf16.mxu0 0
    %191 = vmatpush1.bf16.msra.mxu0 %v123
    %192 = vmatprep.subr.bf16.mxu0 0
    %193 = vmatpush1.bf16.msra.mxu0 %v122
    %194 = vmatprep.subr.bf16.mxu0 0
    %195 = vmatpush2.bf16.msra.mxu0 0
    %196 = vmatprep.subr.bf16.mxu0 0
    %197 = vmatpush2.bf16.msra.mxu0 0
    %198 = vmatprep.subr.bf16.mxu0 0
    %199 = vmatpush2.bf16.msra.mxu0 0
    %200 = vmatprep.subr.bf16.mxu0 0
    %201 = vmatpush2.bf16.msra.mxu0 0
    %202 = vmatprep.subr.bf16.mxu0 0
    %203 = vmatpush2.bf16.msra.mxu0 0
    %204 = vmatprep.subr.bf16.mxu0 0
    %205 = vmatpush2.bf16.msra.mxu0 0
    %206 = vmatprep.subr.bf16.mxu0 0
    %207 = vmatpush2.bf16.msra.mxu0 0
    %208 = vmatprep.subr.bf16.mxu0 0
    %209 = vmatpush2.bf16.msra.mxu0 0
    %210 = vmatprep.mubr.bf16.mxu0 0
    %211 = vmatmul.mubr.bf16.gmra.mxu0 %v162
    %v212 = vpop.f32.mrf.mxu0
    %v213 = vadd.f32 %v90, %v212
    %v214 = vpop.f32.mrf.mxu0
    %v215 = vpop.f32.mrf.mxu0
    %v216 = vadd.f32 %v91, %v215
    %v217 = vpop.f32.mrf.mxu0
    %218 = vmatprep.mubr.bf16.mxu0 0
    %219 = vmatmul.mubr.bf16.gmra.mxu0 %v163
    %v220 = vpop.f32.mrf.mxu0
    %v221 = vadd.f32 %v92, %v220
    %v222 = vpop.f32.mrf.mxu0
    %v223 = vpop.f32.mrf.mxu0
    %v224 = vadd.f32 %v93, %v223
    %v225 = vpop.f32.mrf.mxu0
    %226 = vmatprep.mubr.bf16.mxu0 0
    %227 = vmatmul.mubr.bf16.gmra.mxu0 %v164
    %v228 = vpop.f32.mrf.mxu0
    %v229 = vadd.f32 %v94, %v228
    %v230 = vpop.f32.mrf.mxu0
    %v231 = vpop.f32.mrf.mxu0
    %v232 = vadd.f32 %v95, %v231
    %v233 = vpop.f32.mrf.mxu0
    %234 = vmatprep.mubr.bf16.mxu0 0
    %235 = vmatmul.mubr.bf16.gmra.mxu0 %v165
    %v236 = vpop.f32.mrf.mxu0
    %v237 = vadd.f32 %v96, %v236
    %v238 = vpop.f32.mrf.mxu0
    %v239 = vpop.f32.mrf.mxu0
    %v240 = vadd.f32 %v97, %v239
    %v241 = vpop.f32.mrf.mxu0
    %242 = vmatprep.mubr.bf16.mxu0 0
    %243 = vmatmul.mubr.bf16.gmra.mxu0 %v166
    %v244 = vpop.f32.mrf.mxu0
    %v245 = vadd.f32 %v98, %v244
    %v246 = vpop.f32.mrf.mxu0
    %v247 = vpop.f32.mrf.mxu0
    %v248 = vadd.f32 %v99, %v247
    %v249 = vpop.f32.mrf.mxu0
    %250 = vmatprep.mubr.bf16.mxu0 0
    %251 = vmatmul.mubr.bf16.gmra.mxu0 %v167
    %v252 = vpop.f32.mrf.mxu0
    %v253 = vadd.f32 %v100, %v252
    %v254 = vpop.f32.mrf.mxu0
    %v255 = vpop.f32.mrf.mxu0
    %v256 = vadd.f32 %v101, %v255
    %v257 = vpop.f32.mrf.mxu0
    %258 = vmatprep.mubr.bf16.mxu0 0
    %259 = vmatmul.mubr.bf16.gmra.mxu0 %v168
    %v260 = vpop.f32.mrf.mxu0
    %v261 = vadd.f32 %v102, %v260
    %v262 = vpop.f32.mrf.mxu0
    %v263 = vpop.f32.mrf.mxu0
    %v264 = vadd.f32 %v103, %v263
    %v265 = vpop.f32.mrf.mxu0
    %266 = vmatprep.mubr.bf16.mxu0 0
    %267 = vmatmul.mubr.bf16.gmra.mxu0 %v169
    %v268 = vpop.f32.mrf.mxu0
    %v269 = vadd.f32 %v104, %v268
    %v270 = vpop.f32.mrf.mxu0
    %v271 = vpop.f32.mrf.mxu0
    %v272 = vadd.f32 %v105, %v271
    %v273 = vpop.f32.mrf.mxu0
    %274 = vdwg.mxu0
    %v275 = vpack.c.bf16 %v216, %v213
    %v276 = vpack.c.bf16 %v224, %v221
    %v277 = vpack.c.bf16 %v232, %v229
    %v278 = vpack.c.bf16 %v240, %v237
    %v279 = vpack.c.bf16 %v248, %v245
    %v280 = vpack.c.bf16 %v256, %v253
    %v281 = vpack.c.bf16 %v264, %v261
    %v282 = vpack.c.bf16 %v272, %v269
    %v283 = vld [vmem:[#allocation8] sm:$0xf]
    %v284 = vld [vmem:[#allocation8 + $0x4] sm:$0xf]
    %v285 = vld [vmem:[#allocation8 + $0x8] sm:$0xf]
    %v286 = vld [vmem:[#allocation8 + $0xc] sm:$0xf]
    %v287 = vld [vmem:[#allocation8 + $0x10] sm:$0xf]
    %v288 = vld [vmem:[#allocation8 + $0x14] sm:$0xf]
    %v289 = vld [vmem:[#allocation8 + $0x18] sm:$0xf]
    %v290 = vld [vmem:[#allocation8 + $0x1c] sm:$0xf]
    %v291 = vld [vmem:[#allocation8 + $0x20] sm:$0xf]
    %v292 = vld [vmem:[#allocation8 + $0x24] sm:$0xf]
    %v293 = vld [vmem:[#allocation8 + $0x28] sm:$0xf]
    %v294 = vld [vmem:[#allocation8 + $0x2c] sm:$0xf]
    %v295 = vld [vmem:[#allocation8 + $0x30] sm:$0xf]
    %v296 = vld [vmem:[#allocation8 + $0x34] sm:$0xf]
    %v297 = vld [vmem:[#allocation8 + $0x38] sm:$0xf]
    %v298 = vld [vmem:[#allocation8 + $0x3c] sm:$0xf]
    %v315 = vunpack.c.l.b16 %v283
    %v316 = vunpack.c.l.b16 %v284
    %v317 = vunpack.c.l.b16 %v285
    %v318 = vunpack.c.l.b16 %v286
    %v319 = vunpack.c.l.b16 %v287
    %v320 = vunpack.c.l.b16 %v288
    %v321 = vunpack.c.l.b16 %v289
    %v322 = vunpack.c.l.b16 %v290
    %v323 = vunpack.c.l.b16 %v291
    %v324 = vunpack.c.l.b16 %v292
    %v325 = vunpack.c.l.b16 %v293
    %v326 = vunpack.c.l.b16 %v294
    %v327 = vunpack.c.l.b16 %v295
    %v328 = vunpack.c.l.b16 %v296
    %v329 = vunpack.c.l.b16 %v297
    %v330 = vunpack.c.l.b16 %v298
    %v331 = vpack.c.b16 %v316, %v315
    %v332 = vpack.c.b16 %v318, %v317
    %v333 = vpack.c.b16 %v320, %v319
    %v334 = vpack.c.b16 %v322, %v321
    %v335 = vpack.c.b16 %v324, %v323
    %v336 = vpack.c.b16 %v326, %v325
    %v337 = vpack.c.b16 %v328, %v327
    %v338 = vpack.c.b16 %v330, %v329
    %347 = vmatprep.subr.bf16.mxu0 0
    %348 = vmatpush1.bf16.msra.mxu0 %v338
    %349 = vmatprep.subr.bf16.mxu0 0
    %350 = vmatpush1.bf16.msra.mxu0 %v337
    %351 = vmatprep.subr.bf16.mxu0 0
    %352 = vmatpush1.bf16.msra.mxu0 %v336
    %353 = vmatprep.subr.bf16.mxu0 0
    %354 = vmatpush1.bf16.msra.mxu0 %v335
    %355 = vmatprep.subr.bf16.mxu0 0
    %356 = vmatpush1.bf16.msra.mxu0 %v334
    %357 = vmatprep.subr.bf16.mxu0 0
    %358 = vmatpush1.bf16.msra.mxu0 %v333
    %359 = vmatprep.subr.bf16.mxu0 0
    %360 = vmatpush1.bf16.msra.mxu0 %v332
    %361 = vmatprep.subr.bf16.mxu0 0
    %362 = vmatpush1.bf16.msra.mxu0 %v331
    %363 = vmatprep.subr.bf16.mxu0 0
    %364 = vmatpush2.bf16.msra.mxu0 0
    %365 = vmatprep.subr.bf16.mxu0 0
    %366 = vmatpush2.bf16.msra.mxu0 0
    %367 = vmatprep.subr.bf16.mxu0 0
    %368 = vmatpush2.bf16.msra.mxu0 0
    %369 = vmatprep.subr.bf16.mxu0 0
    %370 = vmatpush2.bf16.msra.mxu0 0
    %371 = vmatprep.subr.bf16.mxu0 0
    %372 = vmatpush2.bf16.msra.mxu0 0
    %373 = vmatprep.subr.bf16.mxu0 0
    %374 = vmatpush2.bf16.msra.mxu0 0
    %375 = vmatprep.subr.bf16.mxu0 0
    %376 = vmatpush2.bf16.msra.mxu0 0
    %377 = vmatprep.subr.bf16.mxu0 0
    %378 = vmatpush2.bf16.msra.mxu0 0
    %379 = vmatprep.mubr.bf16.mxu0 0
    %380 = vmatmul.mubr.bf16.gmra.mxu0 %v275
    %v381 = vpop.f32.mrf.mxu0
    %v382 = vadd.f32 0.0, %v381
    %v383 = vpop.f32.mrf.mxu0
    %v384 = vpop.f32.mrf.mxu0
    %v385 = vadd.f32 0.0, %v384
    %v386 = vpop.f32.mrf.mxu0
    %387 = vmatprep.mubr.bf16.mxu0 0
    %388 = vmatmul.mubr.bf16.gmra.mxu0 %v276
    %v389 = vpop.f32.mrf.mxu0
    %v390 = vadd.f32 0.0, %v389
    %v391 = vpop.f32.mrf.mxu0
    %v392 = vpop.f32.mrf.mxu0
    %v393 = vadd.f32 0.0, %v392
    %v394 = vpop.f32.mrf.mxu0
    %395 = vmatprep.mubr.bf16.mxu0 0
    %396 = vmatmul.mubr.bf16.gmra.mxu0 %v277
    %v397 = vpop.f32.mrf.mxu0
    %v398 = vadd.f32 0.0, %v397
    %v399 = vpop.f32.mrf.mxu0
    %v400 = vpop.f32.mrf.mxu0
    %v401 = vadd.f32 0.0, %v400
    %v402 = vpop.f32.mrf.mxu0
    %403 = vmatprep.mubr.bf16.mxu0 0
    %404 = vmatmul.mubr.bf16.gmra.mxu0 %v278
    %v405 = vpop.f32.mrf.mxu0
    %v406 = vadd.f32 0.0, %v405
    %v407 = vpop.f32.mrf.mxu0
    %v408 = vpop.f32.mrf.mxu0
    %v409 = vadd.f32 0.0, %v408
    %v410 = vpop.f32.mrf.mxu0
    %411 = vmatprep.mubr.bf16.mxu0 0
    %412 = vmatmul.mubr.bf16.gmra.mxu0 %v279
    %v413 = vpop.f32.mrf.mxu0
    %v414 = vadd.f32 0.0, %v413
    %v415 = vpop.f32.mrf.mxu0
    %v416 = vpop.f32.mrf.mxu0
    %v417 = vadd.f32 0.0, %v416
    %v418 = vpop.f32.mrf.mxu0
    %419 = vmatprep.mubr.bf16.mxu0 0
    %420 = vmatmul.mubr.bf16.gmra.mxu0 %v280
    %v421 = vpop.f32.mrf.mxu0
    %v422 = vadd.f32 0.0, %v421
    %v423 = vpop.f32.mrf.mxu0
    %v424 = vpop.f32.mrf.mxu0
    %v425 = vadd.f32 0.0, %v424
    %v426 = vpop.f32.mrf.mxu0
    %427 = vmatprep.mubr.bf16.mxu0 0
    %428 = vmatmul.mubr.bf16.gmra.mxu0 %v281
    %v429 = vpop.f32.mrf.mxu0
    %v430 = vadd.f32 0.0, %v429
    %v431 = vpop.f32.mrf.mxu0
    %v432 = vpop.f32.mrf.mxu0
    %v433 = vadd.f32 0.0, %v432
    %v434 = vpop.f32.mrf.mxu0
    %435 = vmatprep.mubr.bf16.mxu0 0
    %436 = vmatmul.mubr.bf16.gmra.mxu0 %v282
    %v437 = vpop.f32.mrf.mxu0
    %v438 = vadd.f32 0.0, %v437
    %v439 = vpop.f32.mrf.mxu0
    %v440 = vpop.f32.mrf.mxu0
    %v441 = vadd.f32 0.0, %v440
    %v442 = vpop.f32.mrf.mxu0
    %443 = vdwg.mxu0
    %v444 = vmax.f32 %v382, 0.0
    %v445 = vmax.f32 %v385, 0.0
    %v446 = vmax.f32 %v390, 0.0
    %v447 = vmax.f32 %v393, 0.0
    %v448 = vmax.f32 %v398, 0.0
    %v449 = vmax.f32 %v401, 0.0
    %v450 = vmax.f32 %v406, 0.0
    %v451 = vmax.f32 %v409, 0.0
    %v452 = vmax.f32 %v414, 0.0
    %v453 = vmax.f32 %v417, 0.0
    %v454 = vmax.f32 %v422, 0.0
    %v455 = vmax.f32 %v425, 0.0
    %v456 = vmax.f32 %v430, 0.0
    %v457 = vmax.f32 %v433, 0.0
    %v458 = vmax.f32 %v438, 0.0
    %v459 = vmax.f32 %v441, 0.0
    %v460 = vadd.f32 %v106, %v444
    %v461 = vadd.f32 %v107, %v445
    %v462 = vadd.f32 %v108, %v446
    %v463 = vadd.f32 %v109, %v447
    %v464 = vadd.f32 %v110, %v448
    %v465 = vadd.f32 %v111, %v449
    %v466 = vadd.f32 %v112, %v450
    %v467 = vadd.f32 %v113, %v451
    %v468 = vadd.f32 %v114, %v452
    %v469 = vadd.f32 %v115, %v453
    %v470 = vadd.f32 %v116, %v454
    %v471 = vadd.f32 %v117, %v455
    %v472 = vadd.f32 %v118, %v456
    %v473 = vadd.f32 %v119, %v457
    %v474 = vadd.f32 %v120, %v458
    %v475 = vadd.f32 %v121, %v459
    %v476 = vpack.c.bf16 %v461, %v460
    %v477 = vpack.c.bf16 %v463, %v462
    %v478 = vpack.c.bf16 %v465, %v464
    %v479 = vpack.c.bf16 %v467, %v466
    %v480 = vpack.c.bf16 %v469, %v468
    %v481 = vpack.c.bf16 %v471, %v470
    %v482 = vpack.c.bf16 %v473, %v472
    %v483 = vpack.c.bf16 %v475, %v474
    %484 = vmatprep.subr.bf16.mxu0 0
    %485 = vmatpush1.bf16.msra.mxu0 %v483
    %486 = vmatprep.subr.bf16.mxu0 0
    %487 = vmatpush1.bf16.msra.mxu0 %v482
    %488 = vmatprep.subr.bf16.mxu0 0
    %489 = vmatpush1.bf16.msra.mxu0 %v481
    %490 = vmatprep.subr.bf16.mxu0 0
    %491 = vmatpush1.bf16.msra.mxu0 %v480
    %492 = vmatprep.subr.bf16.mxu0 0
    %493 = vmatpush1.bf16.msra.mxu0 %v479
    %494 = vmatprep.subr.bf16.mxu0 0
    %495 = vmatpush1.bf16.msra.mxu0 %v478
    %496 = vmatprep.subr.bf16.mxu0 0
    %497 = vmatpush1.bf16.msra.mxu0 %v477
    %498 = vmatprep.subr.bf16.mxu0 0
    %499 = vmatpush1.bf16.msra.mxu0 %v476
    %500 = vmatprep.subr.bf16.mxu0 0
    %501 = vmatpush2.bf16.msra.mxu0 0
    %502 = vmatprep.subr.bf16.mxu0 0
    %503 = vmatpush2.bf16.msra.mxu0 0
    %504 = vmatprep.subr.bf16.mxu0 0
    %505 = vmatpush2.bf16.msra.mxu0 0
    %506 = vmatprep.subr.bf16.mxu0 0
    %507 = vmatpush2.bf16.msra.mxu0 0
    %508 = vmatprep.subr.bf16.mxu0 0
    %509 = vmatpush2.bf16.msra.mxu0 0
    %510 = vmatprep.subr.bf16.mxu0 0
    %511 = vmatpush2.bf16.msra.mxu0 0
    %512 = vmatprep.subr.bf16.mxu0 0
    %513 = vmatpush2.bf16.msra.mxu0 0
    %514 = vmatprep.subr.bf16.mxu0 0
    %515 = vmatpush2.bf16.msra.mxu0 0
    %516 = vmatprep.mubr.bf16.mxu0 0
    %517 = vmatmul.mubr.bf16.gmra.mxu0 %v162
    %v518 = vpop.f32.mrf.mxu0
    %v519 = vadd.f32 %v90, %v518
    %v520 = vpop.f32.mrf.mxu0
    %v521 = vpop.f32.mrf.mxu0
    %v522 = vadd.f32 %v91, %v521
    %v523 = vpop.f32.mrf.mxu0
    %524 = vmatprep.mubr.bf16.mxu0 0
    %525 = vmatmul.mubr.bf16.gmra.mxu0 %v163
    %v526 = vpop.f32.mrf.mxu0
    %v527 = vadd.f32 %v92, %v526
    %v528 = vpop.f32.mrf.mxu0
    %v529 = vpop.f32.mrf.mxu0
    %v530 = vadd.f32 %v93, %v529
    %v531 = vpop.f32.mrf.mxu0
    %532 = vmatprep.mubr.bf16.mxu0 0
    %533 = vmatmul.mubr.bf16.gmra.mxu0 %v164
    %v534 = vpop.f32.mrf.mxu0
    %v535 = vadd.f32 %v94, %v534
    %v536 = vpop.f32.mrf.mxu0
    %v537 = vpop.f32.mrf.mxu0
    %v538 = vadd.f32 %v95, %v537
    %v539 = vpop.f32.mrf.mxu0
    %540 = vmatprep.mubr.bf16.mxu0 0
    %541 = vmatmul.mubr.bf16.gmra.mxu0 %v165
    %v542 = vpop.f32.mrf.mxu0
    %v543 = vadd.f32 %v96, %v542
    %v544 = vpop.f32.mrf.mxu0
    %v545 = vpop.f32.mrf.mxu0
    %v546 = vadd.f32 %v97, %v545
    %v547 = vpop.f32.mrf.mxu0
    %548 = vmatprep.mubr.bf16.mxu0 0
    %549 = vmatmul.mubr.bf16.gmra.mxu0 %v166
    %v550 = vpop.f32.mrf.mxu0
    %v551 = vadd.f32 %v98, %v550
    %v552 = vpop.f32.mrf.mxu0
    %v553 = vpop.f32.mrf.mxu0
    %v554 = vadd.f32 %v99, %v553
    %v555 = vpop.f32.mrf.mxu0
    %556 = vmatprep.mubr.bf16.mxu0 0
    %557 = vmatmul.mubr.bf16.gmra.mxu0 %v167
    %v558 = vpop.f32.mrf.mxu0
    %v559 = vadd.f32 %v100, %v558
    %v560 = vpop.f32.mrf.mxu0
    %v561 = vpop.f32.mrf.mxu0
    %v562 = vadd.f32 %v101, %v561
    %v563 = vpop.f32.mrf.mxu0
    %564 = vmatprep.mubr.bf16.mxu0 0
    %565 = vmatmul.mubr.bf16.gmra.mxu0 %v168
    %v566 = vpop.f32.mrf.mxu0
    %v567 = vadd.f32 %v102, %v566
    %v568 = vpop.f32.mrf.mxu0
    %v569 = vpop.f32.mrf.mxu0
    %v570 = vadd.f32 %v103, %v569
    %v571 = vpop.f32.mrf.mxu0
    %572 = vmatprep.mubr.bf16.mxu0 0
    %573 = vmatmul.mubr.bf16.gmra.mxu0 %v169
    %v574 = vpop.f32.mrf.mxu0
    %v575 = vadd.f32 %v104, %v574
    %v576 = vpop.f32.mrf.mxu0
    %v577 = vpop.f32.mrf.mxu0
    %v578 = vadd.f32 %v105, %v577
    %v579 = vpop.f32.mrf.mxu0
    %580 = vdwg.mxu0
    %v581 = vpack.c.bf16 %v522, %v519
    %v582 = vpack.c.bf16 %v530, %v527
    %v583 = vpack.c.bf16 %v538, %v535
    %v584 = vpack.c.bf16 %v546, %v543
    %v585 = vpack.c.bf16 %v554, %v551
    %v586 = vpack.c.bf16 %v562, %v559
    %v587 = vpack.c.bf16 %v570, %v567
    %v588 = vpack.c.bf16 %v578, %v575
    %s589 = scalar_lea.vmem [#allocation8], 64
    %v590 = vld [vmem:[%s589] sm:$0xf]
    %v591 = vld [vmem:[%s589 + $0x4] sm:$0xf]
    %v592 = vld [vmem:[%s589 + $0x8] sm:$0xf]
    %v593 = vld [vmem:[%s589 + $0xc] sm:$0xf]
    %v594 = vld [vmem:[%s589 + $0x10] sm:$0xf]
    %v595 = vld [vmem:[%s589 + $0x14] sm:$0xf]
    %v596 = vld [vmem:[%s589 + $0x18] sm:$0xf]
    %v597 = vld [vmem:[%s589 + $0x1c] sm:$0xf]
    %v598 = vld [vmem:[%s589 + $0x20] sm:$0xf]
    %v599 = vld [vmem:[%s589 + $0x24] sm:$0xf]
    %v600 = vld [vmem:[%s589 + $0x28] sm:$0xf]
    %v601 = vld [vmem:[%s589 + $0x2c] sm:$0xf]
    %v602 = vld [vmem:[%s589 + $0x30] sm:$0xf]
    %v603 = vld [vmem:[%s589 + $0x34] sm:$0xf]
    %v604 = vld [vmem:[%s589 + $0x38] sm:$0xf]
    %v605 = vld [vmem:[%s589 + $0x3c] sm:$0xf]
    %v622 = vunpack.c.l.b16 %v590
    %v623 = vunpack.c.l.b16 %v591
    %v624 = vunpack.c.l.b16 %v592
    %v625 = vunpack.c.l.b16 %v593
    %v626 = vunpack.c.l.b16 %v594
    %v627 = vunpack.c.l.b16 %v595
    %v628 = vunpack.c.l.b16 %v596
    %v629 = vunpack.c.l.b16 %v597
    %v630 = vunpack.c.l.b16 %v598
    %v631 = vunpack.c.l.b16 %v599
    %v632 = vunpack.c.l.b16 %v600
    %v633 = vunpack.c.l.b16 %v601
    %v634 = vunpack.c.l.b16 %v602
    %v635 = vunpack.c.l.b16 %v603
    %v636 = vunpack.c.l.b16 %v604
    %v637 = vunpack.c.l.b16 %v605
    %v638 = vpack.c.b16 %v623, %v622
    %v639 = vpack.c.b16 %v625, %v624
    %v640 = vpack.c.b16 %v627, %v626
    %v641 = vpack.c.b16 %v629, %v628
    %v642 = vpack.c.b16 %v631, %v630
    %v643 = vpack.c.b16 %v633, %v632
    %v644 = vpack.c.b16 %v635, %v634
    %v645 = vpack.c.b16 %v637, %v636
    %654 = vmatprep.subr.bf16.mxu0 0
    %655 = vmatpush1.bf16.msra.mxu0 %v645
    %656 = vmatprep.subr.bf16.mxu0 0
    %657 = vmatpush1.bf16.msra.mxu0 %v644
    %658 = vmatprep.subr.bf16.mxu0 0
    %659 = vmatpush1.bf16.msra.mxu0 %v643
    %660 = vmatprep.subr.bf16.mxu0 0
    %661 = vmatpush1.bf16.msra.mxu0 %v642
    %662 = vmatprep.subr.bf16.mxu0 0
    %663 = vmatpush1.bf16.msra.mxu0 %v641
    %664 = vmatprep.subr.bf16.mxu0 0
    %665 = vmatpush1.bf16.msra.mxu0 %v640
    %666 = vmatprep.subr.bf16.mxu0 0
    %667 = vmatpush1.bf16.msra.mxu0 %v639
    %668 = vmatprep.subr.bf16.mxu0 0
    %669 = vmatpush1.bf16.msra.mxu0 %v638
    %670 = vmatprep.subr.bf16.mxu0 0
    %671 = vmatpush2.bf16.msra.mxu0 0
    %672 = vmatprep.subr.bf16.mxu0 0
    %673 = vmatpush2.bf16.msra.mxu0 0
    %674 = vmatprep.subr.bf16.mxu0 0
    %675 = vmatpush2.bf16.msra.mxu0 0
    %676 = vmatprep.subr.bf16.mxu0 0
    %677 = vmatpush2.bf16.msra.mxu0 0
    %678 = vmatprep.subr.bf16.mxu0 0
    %679 = vmatpush2.bf16.msra.mxu0 0
    %680 = vmatprep.subr.bf16.mxu0 0
    %681 = vmatpush2.bf16.msra.mxu0 0
    %682 = vmatprep.subr.bf16.mxu0 0
    %683 = vmatpush2.bf16.msra.mxu0 0
    %684 = vmatprep.subr.bf16.mxu0 0
    %685 = vmatpush2.bf16.msra.mxu0 0
    %686 = vmatprep.mubr.bf16.mxu0 0
    %687 = vmatmul.mubr.bf16.gmra.mxu0 %v581
    %v688 = vpop.f32.mrf.mxu0
    %v689 = vadd.f32 0.0, %v688
    %v690 = vpop.f32.mrf.mxu0
    %v691 = vpop.f32.mrf.mxu0
    %v692 = vadd.f32 0.0, %v691
    %v693 = vpop.f32.mrf.mxu0
    %694 = vmatprep.mubr.bf16.mxu0 0
    %695 = vmatmul.mubr.bf16.gmra.mxu0 %v582
    %v696 = vpop.f32.mrf.mxu0
    %v697 = vadd.f32 0.0, %v696
    %v698 = vpop.f32.mrf.mxu0
    %v699 = vpop.f32.mrf.mxu0
    %v700 = vadd.f32 0.0, %v699
    %v701 = vpop.f32.mrf.mxu0
    %702 = vmatprep.mubr.bf16.mxu0 0
    %703 = vmatmul.mubr.bf16.gmra.mxu0 %v583
    %v704 = vpop.f32.mrf.mxu0
    %v705 = vadd.f32 0.0, %v704
    %v706 = vpop.f32.mrf.mxu0
    %v707 = vpop.f32.mrf.mxu0
    %v708 = vadd.f32 0.0, %v707
    %v709 = vpop.f32.mrf.mxu0
    %710 = vmatprep.mubr.bf16.mxu0 0
    %711 = vmatmul.mubr.bf16.gmra.mxu0 %v584
    %v712 = vpop.f32.mrf.mxu0
    %v713 = vadd.f32 0.0, %v712
    %v714 = vpop.f32.mrf.mxu0
    %v715 = vpop.f32.mrf.mxu0
    %v716 = vadd.f32 0.0, %v715
    %v717 = vpop.f32.mrf.mxu0
    %718 = vmatprep.mubr.bf16.mxu0 0
    %719 = vmatmul.mubr.bf16.gmra.mxu0 %v585
    %v720 = vpop.f32.mrf.mxu0
    %v721 = vadd.f32 0.0, %v720
    %v722 = vpop.f32.mrf.mxu0
    %v723 = vpop.f32.mrf.mxu0
    %v724 = vadd.f32 0.0, %v723
    %v725 = vpop.f32.mrf.mxu0
    %726 = vmatprep.mubr.bf16.mxu0 0
    %727 = vmatmul.mubr.bf16.gmra.mxu0 %v586
    %v728 = vpop.f32.mrf.mxu0
    %v729 = vadd.f32 0.0, %v728
    %v730 = vpop.f32.mrf.mxu0
    %v731 = vpop.f32.mrf.mxu0
    %v732 = vadd.f32 0.0, %v731
    %v733 = vpop.f32.mrf.mxu0
    %734 = vmatprep.mubr.bf16.mxu0 0
    %735 = vmatmul.mubr.bf16.gmra.mxu0 %v587
    %v736 = vpop.f32.mrf.mxu0
    %v737 = vadd.f32 0.0, %v736
    %v738 = vpop.f32.mrf.mxu0
    %v739 = vpop.f32.mrf.mxu0
    %v740 = vadd.f32 0.0, %v739
    %v741 = vpop.f32.mrf.mxu0
    %742 = vmatprep.mubr.bf16.mxu0 0
    %743 = vmatmul.mubr.bf16.gmra.mxu0 %v588
    %v744 = vpop.f32.mrf.mxu0
    %v745 = vadd.f32 0.0, %v744
    %v746 = vpop.f32.mrf.mxu0
    %v747 = vpop.f32.mrf.mxu0
    %v748 = vadd.f32 0.0, %v747
    %v749 = vpop.f32.mrf.mxu0
    %750 = vdwg.mxu0
    %v751 = vmax.f32 %v689, 0.0
    %v752 = vmax.f32 %v692, 0.0
    %v753 = vmax.f32 %v697, 0.0
    %v754 = vmax.f32 %v700, 0.0
    %v755 = vmax.f32 %v705, 0.0
    %v756 = vmax.f32 %v708, 0.0
    %v757 = vmax.f32 %v713, 0.0
    %v758 = vmax.f32 %v716, 0.0
    %v759 = vmax.f32 %v721, 0.0
    %v760 = vmax.f32 %v724, 0.0
    %v761 = vmax.f32 %v729, 0.0
    %v762 = vmax.f32 %v732, 0.0
    %v763 = vmax.f32 %v737, 0.0
    %v764 = vmax.f32 %v740, 0.0
    %v765 = vmax.f32 %v745, 0.0
    %v766 = vmax.f32 %v748, 0.0
    %v767 = vadd.f32 %v460, %v751
    %v768 = vadd.f32 %v461, %v752
    %v769 = vadd.f32 %v462, %v753
    %v770 = vadd.f32 %v463, %v754
    %v771 = vadd.f32 %v464, %v755
    %v772 = vadd.f32 %v465, %v756
    %v773 = vadd.f32 %v466, %v757
    %v774 = vadd.f32 %v467, %v758
    %v775 = vadd.f32 %v468, %v759
    %v776 = vadd.f32 %v469, %v760
    %v777 = vadd.f32 %v470, %v761
    %v778 = vadd.f32 %v471, %v762
    %v779 = vadd.f32 %v472, %v763
    %v780 = vadd.f32 %v473, %v764
    %v781 = vadd.f32 %v474, %v765
    %v782 = vadd.f32 %v475, %v766
    %v783 = vpack.c.bf16 %v768, %v767
    %v784 = vpack.c.bf16 %v770, %v769
    %v785 = vpack.c.bf16 %v772, %v771
    %v786 = vpack.c.bf16 %v774, %v773
    %v787 = vpack.c.bf16 %v776, %v775
    %v788 = vpack.c.bf16 %v778, %v777
    %v789 = vpack.c.bf16 %v780, %v779
    %v790 = vpack.c.bf16 %v782, %v781
    %791 = vmatprep.subr.bf16.mxu0 0
    %792 = vmatpush1.bf16.msra.mxu0 %v790
    %793 = vmatprep.subr.bf16.mxu0 0
    %794 = vmatpush1.bf16.msra.mxu0 %v789
    %795 = vmatprep.subr.bf16.mxu0 0
    %796 = vmatpush1.bf16.msra.mxu0 %v788
    %797 = vmatprep.subr.bf16.mxu0 0
    %798 = vmatpush1.bf16.msra.mxu0 %v787
    %799 = vmatprep.subr.bf16.mxu0 0
    %800 = vmatpush1.bf16.msra.mxu0 %v786
    %801 = vmatprep.subr.bf16.mxu0 0
    %802 = vmatpush1.bf16.msra.mxu0 %v785
    %803 = vmatprep.subr.bf16.mxu0 0
    %804 = vmatpush1.bf16.msra.mxu0 %v784
    %805 = vmatprep.subr.bf16.mxu0 0
    %806 = vmatpush1.bf16.msra.mxu0 %v783
    %807 = vmatprep.subr.bf16.mxu0 0
    %808 = vmatpush2.bf16.msra.mxu0 0
    %809 = vmatprep.subr.bf16.mxu0 0
    %810 = vmatpush2.bf16.msra.mxu0 0
    %811 = vmatprep.subr.bf16.mxu0 0
    %812 = vmatpush2.bf16.msra.mxu0 0
    %813 = vmatprep.subr.bf16.mxu0 0
    %814 = vmatpush2.bf16.msra.mxu0 0
    %815 = vmatprep.subr.bf16.mxu0 0
    %816 = vmatpush2.bf16.msra.mxu0 0
    %817 = vmatprep.subr.bf16.mxu0 0
    %818 = vmatpush2.bf16.msra.mxu0 0
    %819 = vmatprep.subr.bf16.mxu0 0
    %820 = vmatpush2.bf16.msra.mxu0 0
    %821 = vmatprep.subr.bf16.mxu0 0
    %822 = vmatpush2.bf16.msra.mxu0 0
    %823 = vmatprep.mubr.bf16.mxu0 0
    %824 = vmatmul.mubr.bf16.gmra.mxu0 %v162
    %v825 = vpop.f32.mrf.mxu0
    %v826 = vadd.f32 %v90, %v825
    %v827 = vpop.f32.mrf.mxu0
    %v828 = vpop.f32.mrf.mxu0
    %v829 = vadd.f32 %v91, %v828
    %v830 = vpop.f32.mrf.mxu0
    %831 = vmatprep.mubr.bf16.mxu0 0
    %832 = vmatmul.mubr.bf16.gmra.mxu0 %v163
    %v833 = vpop.f32.mrf.mxu0
    %v834 = vadd.f32 %v92, %v833
    %v835 = vpop.f32.mrf.mxu0
    %v836 = vpop.f32.mrf.mxu0
    %v837 = vadd.f32 %v93, %v836
    %v838 = vpop.f32.mrf.mxu0
    %839 = vmatprep.mubr.bf16.mxu0 0
    %840 = vmatmul.mubr.bf16.gmra.mxu0 %v164
    %v841 = vpop.f32.mrf.mxu0
    %v842 = vadd.f32 %v94, %v841
    %v843 = vpop.f32.mrf.mxu0
    %v844 = vpop.f32.mrf.mxu0
    %v845 = vadd.f32 %v95, %v844
    %v846 = vpop.f32.mrf.mxu0
    %847 = vmatprep.mubr.bf16.mxu0 0
    %848 = vmatmul.mubr.bf16.gmra.mxu0 %v165
    %v849 = vpop.f32.mrf.mxu0
    %v850 = vadd.f32 %v96, %v849
    %v851 = vpop.f32.mrf.mxu0
    %v852 = vpop.f32.mrf.mxu0
    %v853 = vadd.f32 %v97, %v852
    %v854 = vpop.f32.mrf.mxu0
    %855 = vmatprep.mubr.bf16.mxu0 0
    %856 = vmatmul.mubr.bf16.gmra.mxu0 %v166
    %v857 = vpop.f32.mrf.mxu0
    %v858 = vadd.f32 %v98, %v857
    %v859 = vpop.f32.mrf.mxu0
    %v860 = vpop.f32.mrf.mxu0
    %v861 = vadd.f32 %v99, %v860
    %v862 = vpop.f32.mrf.mxu0
    %863 = vmatprep.mubr.bf16.mxu0 0
    %864 = vmatmul.mubr.bf16.gmra.mxu0 %v167
    %v865 = vpop.f32.mrf.mxu0
    %v866 = vadd.f32 %v100, %v865
    %v867 = vpop.f32.mrf.mxu0
    %v868 = vpop.f32.mrf.mxu0
    %v869 = vadd.f32 %v101, %v868
    %v870 = vpop.f32.mrf.mxu0
    %871 = vmatprep.mubr.bf16.mxu0 0
    %872 = vmatmul.mubr.bf16.gmra.mxu0 %v168
    %v873 = vpop.f32.mrf.mxu0
    %v874 = vadd.f32 %v102, %v873
    %v875 = vpop.f32.mrf.mxu0
    %v876 = vpop.f32.mrf.mxu0
    %v877 = vadd.f32 %v103, %v876
    %v878 = vpop.f32.mrf.mxu0
    %879 = vmatprep.mubr.bf16.mxu0 0
    %880 = vmatmul.mubr.bf16.gmra.mxu0 %v169
    %v881 = vpop.f32.mrf.mxu0
    %v882 = vadd.f32 %v104, %v881
    %v883 = vpop.f32.mrf.mxu0
    %v884 = vpop.f32.mrf.mxu0
    %v885 = vadd.f32 %v105, %v884
    %v886 = vpop.f32.mrf.mxu0
    %887 = vdwg.mxu0
    %v888 = vpack.c.bf16 %v829, %v826
    %v889 = vpack.c.bf16 %v837, %v834
    %v890 = vpack.c.bf16 %v845, %v842
    %v891 = vpack.c.bf16 %v853, %v850
    %v892 = vpack.c.bf16 %v861, %v858
    %v893 = vpack.c.bf16 %v869, %v866
    %v894 = vpack.c.bf16 %v877, %v874
    %v895 = vpack.c.bf16 %v885, %v882
    %s896 = scalar_lea.vmem [#allocation8], 128
    %v897 = vld [vmem:[%s896] sm:$0xf]
    %v898 = vld [vmem:[%s896 + $0x4] sm:$0xf]
    %v899 = vld [vmem:[%s896 + $0x8] sm:$0xf]
    %v900 = vld [vmem:[%s896 + $0xc] sm:$0xf]
    %v901 = vld [vmem:[%s896 + $0x10] sm:$0xf]
    %v902 = vld [vmem:[%s896 + $0x14] sm:$0xf]
    %v903 = vld [vmem:[%s896 + $0x18] sm:$0xf]
    %v904 = vld [vmem:[%s896 + $0x1c] sm:$0xf]
    %v905 = vld [vmem:[%s896 + $0x20] sm:$0xf]
    %v906 = vld [vmem:[%s896 + $0x24] sm:$0xf]
    %v907 = vld [vmem:[%s896 + $0x28] sm:$0xf]
    %v908 = vld [vmem:[%s896 + $0x2c] sm:$0xf]
    %v909 = vld [vmem:[%s896 + $0x30] sm:$0xf]
    %v910 = vld [vmem:[%s896 + $0x34] sm:$0xf]
    %v911 = vld [vmem:[%s896 + $0x38] sm:$0xf]
    %v912 = vld [vmem:[%s896 + $0x3c] sm:$0xf]
    %v929 = vunpack.c.l.b16 %v897
    %v930 = vunpack.c.l.b16 %v898
    %v931 = vunpack.c.l.b16 %v899
    %v932 = vunpack.c.l.b16 %v900
    %v933 = vunpack.c.l.b16 %v901
    %v934 = vunpack.c.l.b16 %v902
    %v935 = vunpack.c.l.b16 %v903
    %v936 = vunpack.c.l.b16 %v904
    %v937 = vunpack.c.l.b16 %v905
    %v938 = vunpack.c.l.b16 %v906
    %v939 = vunpack.c.l.b16 %v907
    %v940 = vunpack.c.l.b16 %v908
    %v941 = vunpack.c.l.b16 %v909
    %v942 = vunpack.c.l.b16 %v910
    %v943 = vunpack.c.l.b16 %v911
    %v944 = vunpack.c.l.b16 %v912
    %v945 = vpack.c.b16 %v930, %v929
    %v946 = vpack.c.b16 %v932, %v931
    %v947 = vpack.c.b16 %v934, %v933
    %v948 = vpack.c.b16 %v936, %v935
    %v949 = vpack.c.b16 %v938, %v937
    %v950 = vpack.c.b16 %v940, %v939
    %v951 = vpack.c.b16 %v942, %v941
    %v952 = vpack.c.b16 %v944, %v943
    %961 = vmatprep.subr.bf16.mxu0 0
    %962 = vmatpush1.bf16.msra.mxu0 %v952
    %963 = vmatprep.subr.bf16.mxu0 0
    %964 = vmatpush1.bf16.msra.mxu0 %v951
    %965 = vmatprep.subr.bf16.mxu0 0
    %966 = vmatpush1.bf16.msra.mxu0 %v950
    %967 = vmatprep.subr.bf16.mxu0 0
    %968 = vmatpush1.bf16.msra.mxu0 %v949
    %969 = vmatprep.subr.bf16.mxu0 0
    %970 = vmatpush1.bf16.msra.mxu0 %v948
    %971 = vmatprep.subr.bf16.mxu0 0
    %972 = vmatpush1.bf16.msra.mxu0 %v947
    %973 = vmatprep.subr.bf16.mxu0 0
    %974 = vmatpush1.bf16.msra.mxu0 %v946
    %975 = vmatprep.subr.bf16.mxu0 0
    %976 = vmatpush1.bf16.msra.mxu0 %v945
    %977 = vmatprep.subr.bf16.mxu0 0
    %978 = vmatpush2.bf16.msra.mxu0 0
    %979 = vmatprep.subr.bf16.mxu0 0
    %980 = vmatpush2.bf16.msra.mxu0 0
    %981 = vmatprep.subr.bf16.mxu0 0
    %982 = vmatpush2.bf16.msra.mxu0 0
    %983 = vmatprep.subr.bf16.mxu0 0
    %984 = vmatpush2.bf16.msra.mxu0 0
    %985 = vmatprep.subr.bf16.mxu0 0
    %986 = vmatpush2.bf16.msra.mxu0 0
    %987 = vmatprep.subr.bf16.mxu0 0
    %988 = vmatpush2.bf16.msra.mxu0 0
    %989 = vmatprep.subr.bf16.mxu0 0
    %990 = vmatpush2.bf16.msra.mxu0 0
    %991 = vmatprep.subr.bf16.mxu0 0
    %992 = vmatpush2.bf16.msra.mxu0 0
    %993 = vmatprep.mubr.bf16.mxu0 0
    %994 = vmatmul.mubr.bf16.gmra.mxu0 %v888
    %v995 = vpop.f32.mrf.mxu0
    %v996 = vadd.f32 0.0, %v995
    %v997 = vpop.f32.mrf.mxu0
    %v998 = vpop.f32.mrf.mxu0
    %v999 = vadd.f32 0.0, %v998
    %v1000 = vpop.f32.mrf.mxu0
    %1001 = vmatprep.mubr.bf16.mxu0 0
    %1002 = vmatmul.mubr.bf16.gmra.mxu0 %v889
    %v1003 = vpop.f32.mrf.mxu0
    %v1004 = vadd.f32 0.0, %v1003
    %v1005 = vpop.f32.mrf.mxu0
    %v1006 = vpop.f32.mrf.mxu0
    %v1007 = vadd.f32 0.0, %v1006
    %v1008 = vpop.f32.mrf.mxu0
    %1009 = vmatprep.mubr.bf16.mxu0 0
    %1010 = vmatmul.mubr.bf16.gmra.mxu0 %v890
    %v1011 = vpop.f32.mrf.mxu0
    %v1012 = vadd.f32 0.0, %v1011
    %v1013 = vpop.f32.mrf.mxu0
    %v1014 = vpop.f32.mrf.mxu0
    %v1015 = vadd.f32 0.0, %v1014
    %v1016 = vpop.f32.mrf.mxu0
    %1017 = vmatprep.mubr.bf16.mxu0 0
    %1018 = vmatmul.mubr.bf16.gmra.mxu0 %v891
    %v1019 = vpop.f32.mrf.mxu0
    %v1020 = vadd.f32 0.0, %v1019
    %v1021 = vpop.f32.mrf.mxu0
    %v1022 = vpop.f32.mrf.mxu0
    %v1023 = vadd.f32 0.0, %v1022
    %v1024 = vpop.f32.mrf.mxu0
    %1025 = vmatprep.mubr.bf16.mxu0 0
    %1026 = vmatmul.mubr.bf16.gmra.mxu0 %v892
    %v1027 = vpop.f32.mrf.mxu0
    %v1028 = vadd.f32 0.0, %v1027
    %v1029 = vpop.f32.mrf.mxu0
    %v1030 = vpop.f32.mrf.mxu0
    %v1031 = vadd.f32 0.0, %v1030
    %v1032 = vpop.f32.mrf.mxu0
    %1033 = vmatprep.mubr.bf16.mxu0 0
    %1034 = vmatmul.mubr.bf16.gmra.mxu0 %v893
    %v1035 = vpop.f32.mrf.mxu0
    %v1036 = vadd.f32 0.0, %v1035
    %v1037 = vpop.f32.mrf.mxu0
    %v1038 = vpop.f32.mrf.mxu0
    %v1039 = vadd.f32 0.0, %v1038
    %v1040 = vpop.f32.mrf.mxu0
    %1041 = vmatprep.mubr.bf16.mxu0 0
    %1042 = vmatmul.mubr.bf16.gmra.mxu0 %v894
    %v1043 = vpop.f32.mrf.mxu0
    %v1044 = vadd.f32 0.0, %v1043
    %v1045 = vpop.f32.mrf.mxu0
    %v1046 = vpop.f32.mrf.mxu0
    %v1047 = vadd.f32 0.0, %v1046
    %v1048 = vpop.f32.mrf.mxu0
    %1049 = vmatprep.mubr.bf16.mxu0 0
    %1050 = vmatmul.mubr.bf16.gmra.mxu0 %v895
    %v1051 = vpop.f32.mrf.mxu0
    %v1052 = vadd.f32 0.0, %v1051
    %v1053 = vpop.f32.mrf.mxu0
    %v1054 = vpop.f32.mrf.mxu0
    %v1055 = vadd.f32 0.0, %v1054
    %v1056 = vpop.f32.mrf.mxu0
    %1057 = vdwg.mxu0
    %v1058 = vmax.f32 %v996, 0.0
    %v1059 = vmax.f32 %v999, 0.0
    %v1060 = vmax.f32 %v1004, 0.0
    %v1061 = vmax.f32 %v1007, 0.0
    %v1062 = vmax.f32 %v1012, 0.0
    %v1063 = vmax.f32 %v1015, 0.0
    %v1064 = vmax.f32 %v1020, 0.0
    %v1065 = vmax.f32 %v1023, 0.0
    %v1066 = vmax.f32 %v1028, 0.0
    %v1067 = vmax.f32 %v1031, 0.0
    %v1068 = vmax.f32 %v1036, 0.0
    %v1069 = vmax.f32 %v1039, 0.0
    %v1070 = vmax.f32 %v1044, 0.0
    %v1071 = vmax.f32 %v1047, 0.0
    %v1072 = vmax.f32 %v1052, 0.0
    %v1073 = vmax.f32 %v1055, 0.0
    %v1074 = vadd.f32 %v767, %v1058
    %v1075 = vadd.f32 %v768, %v1059
    %v1076 = vadd.f32 %v769, %v1060
    %v1077 = vadd.f32 %v770, %v1061
    %v1078 = vadd.f32 %v771, %v1062
    %v1079 = vadd.f32 %v772, %v1063
    %v1080 = vadd.f32 %v773, %v1064
    %v1081 = vadd.f32 %v774, %v1065
    %v1082 = vadd.f32 %v775, %v1066
    %v1083 = vadd.f32 %v776, %v1067
    %v1084 = vadd.f32 %v777, %v1068
    %v1085 = vadd.f32 %v778, %v1069
    %v1086 = vadd.f32 %v779, %v1070
    %v1087 = vadd.f32 %v780, %v1071
    %v1088 = vadd.f32 %v781, %v1072
    %v1089 = vadd.f32 %v782, %v1073
    %v1090 = vpack.c.bf16 %v1075, %v1074
    %v1091 = vpack.c.bf16 %v1077, %v1076
    %v1092 = vpack.c.bf16 %v1079, %v1078
    %v1093 = vpack.c.bf16 %v1081, %v1080
    %v1094 = vpack.c.bf16 %v1083, %v1082
    %v1095 = vpack.c.bf16 %v1085, %v1084
    %v1096 = vpack.c.bf16 %v1087, %v1086
    %v1097 = vpack.c.bf16 %v1089, %v1088
    %1098 = vmatprep.subr.bf16.mxu0 0
    %1099 = vmatpush1.bf16.msra.mxu0 %v1097
    %1100 = vmatprep.subr.bf16.mxu0 0
    %1101 = vmatpush1.bf16.msra.mxu0 %v1096
    %1102 = vmatprep.subr.bf16.mxu0 0
    %1103 = vmatpush1.bf16.msra.mxu0 %v1095
    %1104 = vmatprep.subr.bf16.mxu0 0
    %1105 = vmatpush1.bf16.msra.mxu0 %v1094
    %1106 = vmatprep.subr.bf16.mxu0 0
    %1107 = vmatpush1.bf16.msra.mxu0 %v1093
    %1108 = vmatprep.subr.bf16.mxu0 0
    %1109 = vmatpush1.bf16.msra.mxu0 %v1092
    %1110 = vmatprep.subr.bf16.mxu0 0
    %1111 = vmatpush1.bf16.msra.mxu0 %v1091
    %1112 = vmatprep.subr.bf16.mxu0 0
    %1113 = vmatpush1.bf16.msra.mxu0 %v1090
    %1114 = vmatprep.subr.bf16.mxu0 0
    %1115 = vmatpush2.bf16.msra.mxu0 0
    %1116 = vmatprep.subr.bf16.mxu0 0
    %1117 = vmatpush2.bf16.msra.mxu0 0
    %1118 = vmatprep.subr.bf16.mxu0 0
    %1119 = vmatpush2.bf16.msra.mxu0 0
    %1120 = vmatprep.subr.bf16.mxu0 0
    %1121 = vmatpush2.bf16.msra.mxu0 0
    %1122 = vmatprep.subr.bf16.mxu0 0
    %1123 = vmatpush2.bf16.msra.mxu0 0
    %1124 = vmatprep.subr.bf16.mxu0 0
    %1125 = vmatpush2.bf16.msra.mxu0 0
    %1126 = vmatprep.subr.bf16.mxu0 0
    %1127 = vmatpush2.bf16.msra.mxu0 0
    %1128 = vmatprep.subr.bf16.mxu0 0
    %1129 = vmatpush2.bf16.msra.mxu0 0
    %1130 = vmatprep.mubr.bf16.mxu0 0
    %1131 = vmatmul.mubr.bf16.gmra.mxu0 %v162
    %v1132 = vpop.f32.mrf.mxu0
    %v1133 = vadd.f32 %v90, %v1132
    %v1134 = vpop.f32.mrf.mxu0
    %v1135 = vpop.f32.mrf.mxu0
    %v1136 = vadd.f32 %v91, %v1135
    %v1137 = vpop.f32.mrf.mxu0
    %1138 = vmatprep.mubr.bf16.mxu0 0
    %1139 = vmatmul.mubr.bf16.gmra.mxu0 %v163
    %v1140 = vpop.f32.mrf.mxu0
    %v1141 = vadd.f32 %v92, %v1140
    %v1142 = vpop.f32.mrf.mxu0
    %v1143 = vpop.f32.mrf.mxu0
    %v1144 = vadd.f32 %v93, %v1143
    %v1145 = vpop.f32.mrf.mxu0
    %1146 = vmatprep.mubr.bf16.mxu0 0
    %1147 = vmatmul.mubr.bf16.gmra.mxu0 %v164
    %v1148 = vpop.f32.mrf.mxu0
    %v1149 = vadd.f32 %v94, %v1148
    %v1150 = vpop.f32.mrf.mxu0
    %v1151 = vpop.f32.mrf.mxu0
    %v1152 = vadd.f32 %v95, %v1151
    %v1153 = vpop.f32.mrf.mxu0
    %1154 = vmatprep.mubr.bf16.mxu0 0
    %1155 = vmatmul.mubr.bf16.gmra.mxu0 %v165
    %v1156 = vpop.f32.mrf.mxu0
    %v1157 = vadd.f32 %v96, %v1156
    %v1158 = vpop.f32.mrf.mxu0
    %v1159 = vpop.f32.mrf.mxu0
    %v1160 = vadd.f32 %v97, %v1159
    %v1161 = vpop.f32.mrf.mxu0
    %1162 = vmatprep.mubr.bf16.mxu0 0
    %1163 = vmatmul.mubr.bf16.gmra.mxu0 %v166
    %v1164 = vpop.f32.mrf.mxu0
    %v1165 = vadd.f32 %v98, %v1164
    %v1166 = vpop.f32.mrf.mxu0
    %v1167 = vpop.f32.mrf.mxu0
    %v1168 = vadd.f32 %v99, %v1167
    %v1169 = vpop.f32.mrf.mxu0
    %1170 = vmatprep.mubr.bf16.mxu0 0
    %1171 = vmatmul.mubr.bf16.gmra.mxu0 %v167
    %v1172 = vpop.f32.mrf.mxu0
    %v1173 = vadd.f32 %v100, %v1172
    %v1174 = vpop.f32.mrf.mxu0
    %v1175 = vpop.f32.mrf.mxu0
    %v1176 = vadd.f32 %v101, %v1175
    %v1177 = vpop.f32.mrf.mxu0
    %1178 = vmatprep.mubr.bf16.mxu0 0
    %1179 = vmatmul.mubr.bf16.gmra.mxu0 %v168
    %v1180 = vpop.f32.mrf.mxu0
    %v1181 = vadd.f32 %v102, %v1180
    %v1182 = vpop.f32.mrf.mxu0
    %v1183 = vpop.f32.mrf.mxu0
    %v1184 = vadd.f32 %v103, %v1183
    %v1185 = vpop.f32.mrf.mxu0
    %1186 = vmatprep.mubr.bf16.mxu0 0
    %1187 = vmatmul.mubr.bf16.gmra.mxu0 %v169
    %v1188 = vpop.f32.mrf.mxu0
    %v1189 = vadd.f32 %v104, %v1188
    %v1190 = vpop.f32.mrf.mxu0
    %v1191 = vpop.f32.mrf.mxu0
    %v1192 = vadd.f32 %v105, %v1191
    %v1193 = vpop.f32.mrf.mxu0
    %1194 = vdwg.mxu0
    %v1195 = vpack.c.bf16 %v1136, %v1133
    %v1196 = vpack.c.bf16 %v1144, %v1141
    %v1197 = vpack.c.bf16 %v1152, %v1149
    %v1198 = vpack.c.bf16 %v1160, %v1157
    %v1199 = vpack.c.bf16 %v1168, %v1165
    %v1200 = vpack.c.bf16 %v1176, %v1173
    %v1201 = vpack.c.bf16 %v1184, %v1181
    %v1202 = vpack.c.bf16 %v1192, %v1189
    %s1203 = scalar_lea.vmem [#allocation8], 192
    %v1204 = vld [vmem:[%s1203] sm:$0xf]
    %v1205 = vld [vmem:[%s1203 + $0x4] sm:$0xf]
    %v1206 = vld [vmem:[%s1203 + $0x8] sm:$0xf]
    %v1207 = vld [vmem:[%s1203 + $0xc] sm:$0xf]
    %v1208 = vld [vmem:[%s1203 + $0x10] sm:$0xf]
    %v1209 = vld [vmem:[%s1203 + $0x14] sm:$0xf]
    %v1210 = vld [vmem:[%s1203 + $0x18] sm:$0xf]
    %v1211 = vld [vmem:[%s1203 + $0x1c] sm:$0xf]
    %v1212 = vld [vmem:[%s1203 + $0x20] sm:$0xf]
    %v1213 = vld [vmem:[%s1203 + $0x24] sm:$0xf]
    %v1214 = vld [vmem:[%s1203 + $0x28] sm:$0xf]
    %v1215 = vld [vmem:[%s1203 + $0x2c] sm:$0xf]
    %v1216 = vld [vmem:[%s1203 + $0x30] sm:$0xf]
    %v1217 = vld [vmem:[%s1203 + $0x34] sm:$0xf]
    %v1218 = vld [vmem:[%s1203 + $0x38] sm:$0xf]
    %v1219 = vld [vmem:[%s1203 + $0x3c] sm:$0xf]
    %v1236 = vunpack.c.l.b16 %v1204
    %v1237 = vunpack.c.l.b16 %v1205
    %v1238 = vunpack.c.l.b16 %v1206
    %v1239 = vunpack.c.l.b16 %v1207
    %v1240 = vunpack.c.l.b16 %v1208
    %v1241 = vunpack.c.l.b16 %v1209
    %v1242 = vunpack.c.l.b16 %v1210
    %v1243 = vunpack.c.l.b16 %v1211
    %v1244 = vunpack.c.l.b16 %v1212
    %v1245 = vunpack.c.l.b16 %v1213
    %v1246 = vunpack.c.l.b16 %v1214
    %v1247 = vunpack.c.l.b16 %v1215
    %v1248 = vunpack.c.l.b16 %v1216
    %v1249 = vunpack.c.l.b16 %v1217
    %v1250 = vunpack.c.l.b16 %v1218
    %v1251 = vunpack.c.l.b16 %v1219
    %v1252 = vpack.c.b16 %v1237, %v1236
    %v1253 = vpack.c.b16 %v1239, %v1238
    %v1254 = vpack.c.b16 %v1241, %v1240
    %v1255 = vpack.c.b16 %v1243, %v1242
    %v1256 = vpack.c.b16 %v1245, %v1244
    %v1257 = vpack.c.b16 %v1247, %v1246
    %v1258 = vpack.c.b16 %v1249, %v1248
    %v1259 = vpack.c.b16 %v1251, %v1250
    %1268 = vmatprep.subr.bf16.mxu0 0
    %1269 = vmatpush1.bf16.msra.mxu0 %v1259
    %1270 = vmatprep.subr.bf16.mxu0 0
    %1271 = vmatpush1.bf16.msra.mxu0 %v1258
    %1272 = vmatprep.subr.bf16.mxu0 0
    %1273 = vmatpush1.bf16.msra.mxu0 %v1257
    %1274 = vmatprep.subr.bf16.mxu0 0
    %1275 = vmatpush1.bf16.msra.mxu0 %v1256
    %1276 = vmatprep.subr.bf16.mxu0 0
    %1277 = vmatpush1.bf16.msra.mxu0 %v1255
    %1278 = vmatprep.subr.bf16.mxu0 0
    %1279 = vmatpush1.bf16.msra.mxu0 %v1254
    %1280 = vmatprep.subr.bf16.mxu0 0
    %1281 = vmatpush1.bf16.msra.mxu0 %v1253
    %1282 = vmatprep.subr.bf16.mxu0 0
    %1283 = vmatpush1.bf16.msra.mxu0 %v1252
    %1284 = vmatprep.subr.bf16.mxu0 0
    %1285 = vmatpush2.bf16.msra.mxu0 0
    %1286 = vmatprep.subr.bf16.mxu0 0
    %1287 = vmatpush2.bf16.msra.mxu0 0
    %1288 = vmatprep.subr.bf16.mxu0 0
    %1289 = vmatpush2.bf16.msra.mxu0 0
    %1290 = vmatprep.subr.bf16.mxu0 0
    %1291 = vmatpush2.bf16.msra.mxu0 0
    %1292 = vmatprep.subr.bf16.mxu0 0
    %1293 = vmatpush2.bf16.msra.mxu0 0
    %1294 = vmatprep.subr.bf16.mxu0 0
    %1295 = vmatpush2.bf16.msra.mxu0 0
    %1296 = vmatprep.subr.bf16.mxu0 0
    %1297 = vmatpush2.bf16.msra.mxu0 0
    %1298 = vmatprep.subr.bf16.mxu0 0
    %1299 = vmatpush2.bf16.msra.mxu0 0
    %1300 = vmatprep.mubr.bf16.mxu0 0
    %1301 = vmatmul.mubr.bf16.gmra.mxu0 %v1195
    %v1302 = vpop.f32.mrf.mxu0
    %v1303 = vadd.f32 0.0, %v1302
    %v1304 = vpop.f32.mrf.mxu0
    %v1305 = vpop.f32.mrf.mxu0
    %v1306 = vadd.f32 0.0, %v1305
    %v1307 = vpop.f32.mrf.mxu0
    %1308 = vmatprep.mubr.bf16.mxu0 0
    %1309 = vmatmul.mubr.bf16.gmra.mxu0 %v1196
    %v1310 = vpop.f32.mrf.mxu0
    %v1311 = vadd.f32 0.0, %v1310
    %v1312 = vpop.f32.mrf.mxu0
    %v1313 = vpop.f32.mrf.mxu0
    %v1314 = vadd.f32 0.0, %v1313
    %v1315 = vpop.f32.mrf.mxu0
    %1316 = vmatprep.mubr.bf16.mxu0 0
    %1317 = vmatmul.mubr.bf16.gmra.mxu0 %v1197
    %v1318 = vpop.f32.mrf.mxu0
    %v1319 = vadd.f32 0.0, %v1318
    %v1320 = vpop.f32.mrf.mxu0
    %v1321 = vpop.f32.mrf.mxu0
    %v1322 = vadd.f32 0.0, %v1321
    %v1323 = vpop.f32.mrf.mxu0
    %1324 = vmatprep.mubr.bf16.mxu0 0
    %1325 = vmatmul.mubr.bf16.gmra.mxu0 %v1198
    %v1326 = vpop.f32.mrf.mxu0
    %v1327 = vadd.f32 0.0, %v1326
    %v1328 = vpop.f32.mrf.mxu0
    %v1329 = vpop.f32.mrf.mxu0
    %v1330 = vadd.f32 0.0, %v1329
    %v1331 = vpop.f32.mrf.mxu0
    %1332 = vmatprep.mubr.bf16.mxu0 0
    %1333 = vmatmul.mubr.bf16.gmra.mxu0 %v1199
    %v1334 = vpop.f32.mrf.mxu0
    %v1335 = vadd.f32 0.0, %v1334
    %v1336 = vpop.f32.mrf.mxu0
    %v1337 = vpop.f32.mrf.mxu0
    %v1338 = vadd.f32 0.0, %v1337
    %v1339 = vpop.f32.mrf.mxu0
    %1340 = vmatprep.mubr.bf16.mxu0 0
    %1341 = vmatmul.mubr.bf16.gmra.mxu0 %v1200
    %v1342 = vpop.f32.mrf.mxu0
    %v1343 = vadd.f32 0.0, %v1342
    %v1344 = vpop.f32.mrf.mxu0
    %v1345 = vpop.f32.mrf.mxu0
    %v1346 = vadd.f32 0.0, %v1345
    %v1347 = vpop.f32.mrf.mxu0
    %1348 = vmatprep.mubr.bf16.mxu0 0
    %1349 = vmatmul.mubr.bf16.gmra.mxu0 %v1201
    %v1350 = vpop.f32.mrf.mxu0
    %v1351 = vadd.f32 0.0, %v1350
    %v1352 = vpop.f32.mrf.mxu0
    %v1353 = vpop.f32.mrf.mxu0
    %v1354 = vadd.f32 0.0, %v1353
    %v1355 = vpop.f32.mrf.mxu0
    %1356 = vmatprep.mubr.bf16.mxu0 0
    %1357 = vmatmul.mubr.bf16.gmra.mxu0 %v1202
    %v1358 = vpop.f32.mrf.mxu0
    %v1359 = vadd.f32 0.0, %v1358
    %v1360 = vpop.f32.mrf.mxu0
    %v1361 = vpop.f32.mrf.mxu0
    %v1362 = vadd.f32 0.0, %v1361
    %v1363 = vpop.f32.mrf.mxu0
    %1364 = vdwg.mxu0
    %v1365 = vmax.f32 %v1303, 0.0
    %v1366 = vmax.f32 %v1306, 0.0
    %v1367 = vmax.f32 %v1311, 0.0
    %v1368 = vmax.f32 %v1314, 0.0
    %v1369 = vmax.f32 %v1319, 0.0
    %v1370 = vmax.f32 %v1322, 0.0
    %v1371 = vmax.f32 %v1327, 0.0
    %v1372 = vmax.f32 %v1330, 0.0
    %v1373 = vmax.f32 %v1335, 0.0
    %v1374 = vmax.f32 %v1338, 0.0
    %v1375 = vmax.f32 %v1343, 0.0
    %v1376 = vmax.f32 %v1346, 0.0
    %v1377 = vmax.f32 %v1351, 0.0
    %v1378 = vmax.f32 %v1354, 0.0
    %v1379 = vmax.f32 %v1359, 0.0
    %v1380 = vmax.f32 %v1362, 0.0
    %v1381 = vadd.f32 %v1074, %v1365
    %v1382 = vadd.f32 %v1075, %v1366
    %v1383 = vadd.f32 %v1076, %v1367
    %v1384 = vadd.f32 %v1077, %v1368
    %v1385 = vadd.f32 %v1078, %v1369
    %v1386 = vadd.f32 %v1079, %v1370
    %v1387 = vadd.f32 %v1080, %v1371
    %v1388 = vadd.f32 %v1081, %v1372
    %v1389 = vadd.f32 %v1082, %v1373
    %v1390 = vadd.f32 %v1083, %v1374
    %v1391 = vadd.f32 %v1084, %v1375
    %v1392 = vadd.f32 %v1085, %v1376
    %v1393 = vadd.f32 %v1086, %v1377
    %v1394 = vadd.f32 %v1087, %v1378
    %v1395 = vadd.f32 %v1088, %v1379
    %v1396 = vadd.f32 %v1089, %v1380
    %1397 = vst [vmem:[#allocation10] sm:$0xff] %v1381
    %1398 = vst [vmem:[#allocation10 + $0x8] sm:$0xff] %v1382
    %1399 = vst [vmem:[#allocation10 + $0x10] sm:$0xff] %v1383
    %1400 = vst [vmem:[#allocation10 + $0x18] sm:$0xff] %v1384
    %1401 = vst [vmem:[#allocation10 + $0x20] sm:$0xff] %v1385
    %1402 = vst [vmem:[#allocation10 + $0x28] sm:$0xff] %v1386
    %1403 = vst [vmem:[#allocation10 + $0x30] sm:$0xff] %v1387
    %1404 = vst [vmem:[#allocation10 + $0x38] sm:$0xff] %v1388
    %1405 = vst [vmem:[#allocation10 + $0x40] sm:$0xff] %v1389
    %1406 = vst [vmem:[#allocation10 + $0x48] sm:$0xff] %v1390
    %1407 = vst [vmem:[#allocation10 + $0x50] sm:$0xff] %v1391
    %1408 = vst [vmem:[#allocation10 + $0x58] sm:$0xff] %v1392
    %1409 = vst [vmem:[#allocation10 + $0x60] sm:$0xff] %v1393
    %1410 = vst [vmem:[#allocation10 + $0x68] sm:$0xff] %v1394
    %1411 = vst [vmem:[#allocation10 + $0x70] sm:$0xff] %v1395
    %1412 = vst [vmem:[#allocation10 + $0x78] sm:$0xff] %v1396
    // Predicated region
    $region34: #{tpu_custom_call.1} parent=1 // pred_check
      _
    $region35: #{tpu_custom_call.1} parent=1 // pred_check_branch
      %1414 = sbr.rel (0) target = $region37
    $region36: #{tpu_custom_call.1} parent=1 // pred_region
      %s1416 = ssub.s32 2048, 2048
      %1417 = vsyncadd [#allocation4], %s1416
      %s1418 = sshll.u32 [#allocation10], 4
      %s1419 = int_to_ptr.vmem [resolvable:$true] %s1418
      %1424 = dma.vmem_to_hbm [thread:$0]  %s1419, 2048, %s4, [#allocation4], 128, 128, 8
    $region37: #{tpu_custom_call.1} parent=1 // pred_fallthru
      _
    // Predicated region
    $region38: #{tpu_custom_call.1} parent=1 // pred_check
      _
    $region39: #{tpu_custom_call.1} parent=1 // pred_check_branch
      %1426 = sbr.rel (0) target = $region41
    $region40: #{tpu_custom_call.1} parent=1 // pred_region
      %1427 = dma.done [#allocation4], 2048
    $region41: #{tpu_custom_call.1} parent=1 // pred_fallthru
      _
    %1428 = vsyncpa [#allocation3], 1
    %1429 = vsyncpa [#allocation6], 1
    %1430 = vsyncpa [#allocation9], 1
    %1431 = vsyncpa [#allocation4], 1

</llo_original>
